<compile_context>
chip_gen: v6e
topology: v6e:2x2x1
jax: 0.10.0
libtpu: 0.0.40
codegen_flags: <defaults>
</compile_context>

<pallas_src>
import jax
import jax.numpy as jnp
from jax import lax
from jax.experimental import pallas as pl
from jax.experimental.pallas import tpu as pltpu


def _round_up(x, m):
    return (x + m - 1) // m * m


def _make_char_decoder_kernel(L, Bp, H, unroll):
    """Build the kernel for static (L, Bp, H, unroll)."""

    def kernel(xg_ref, h0_ref, c0_ref, whh_ref, wproj_ref, bproj_ref,
               scores_ref, hn_ref, cn_ref, hs_scr):
        # Loop-invariant recurrence weights, held in vregs across all steps.
        whh = whh_ref[...]                                    # (H, Gp) bf16

        def cell(xg, h, c):
            # The only matmul on the serial path: (Bp, H) x (H, 4H), bf16 in,
            # f32 accumulate.  xg already contains x @ W_ih^T + b_ih + b_hh.
            gates = xg + jnp.dot(h.astype(jnp.bfloat16), whh,
                                 preferred_element_type=jnp.float32)
            i_g = jax.nn.sigmoid(gates[:, 0 * H:1 * H])
            f_g = jax.nn.sigmoid(gates[:, 1 * H:2 * H])
            g_g = jnp.tanh(gates[:, 2 * H:3 * H])
            o_g = jax.nn.sigmoid(gates[:, 3 * H:4 * H])
            c_new = f_g * c + i_g * g_g
            h_new = o_g * jnp.tanh(c_new)
            return h_new, c_new

        h = h0_ref[...]
        c = c0_ref[...]
        if unroll:
            # Fully unrolled: all row offsets static (L is small).
            for t in range(L):
                h, c = cell(xg_ref[t * Bp:(t + 1) * Bp, :], h, c)
                hs_scr[t * Bp:(t + 1) * Bp, :] = h
        else:
            # Bounded vreg live ranges for larger L.
            def body(t, carry):
                h_t, c_t = carry
                row = pl.multiple_of(t * Bp, Bp)
                h_t, c_t = cell(xg_ref[pl.ds(row, Bp), :], h_t, c_t)
                hs_scr[pl.ds(row, Bp), :] = h_t
                return h_t, c_t

            h, c = lax.fori_loop(0, L, body, (h, c))

        hn_ref[...] = h
        cn_ref[...] = c

        # Batched vocab projection: one bf16 MXU matmul over every stored h_t
        # and a single lane-dense (L*Bp, Vp) store.
        scores_ref[...] = (
            jnp.dot(hs_scr[...].astype(jnp.bfloat16), wproj_ref[...],
                    preferred_element_type=jnp.float32)
            + bproj_ref[...])

    return kernel


def precompute_char_decoder_tables(params):
    """One-time weight packing (amortized across forward calls).

    Folds decoderCharEmb + W_ih + (b_ih + b_hh) into a per-character gate
    table and casts the critical-path matmul weights to bf16.
    """
    emb, w_ih, w_hh, b_ih, b_hh, w_proj, b_proj = params
    H = w_hh.shape[1]
    V = w_proj.shape[0]
    G = 4 * H
    Gp = _round_up(G, 128)            # lane-dense gate slab width
    Vp = _round_up(V, 128)            # lane-dense scores width

    gate_table = jnp.dot(emb.astype(jnp.float32),
                         jnp.transpose(w_ih).astype(jnp.float32),
                         precision=jax.lax.Precision.HIGHEST)
    gate_table = gate_table + (b_ih + b_hh).astype(jnp.float32)
    gate_table = jnp.pad(gate_table, ((0, 0), (0, Gp - G)))     # (vocab, Gp)

    whh_t = jnp.pad(jnp.transpose(w_hh).astype(jnp.float32),
                    ((0, 0), (0, Gp - G))).astype(jnp.bfloat16)    # (H, Gp)
    wproj_t = jnp.pad(jnp.transpose(w_proj).astype(jnp.float32),
                      ((0, 0), (0, Vp - V))).astype(jnp.bfloat16)  # (H, Vp)
    bproj = jnp.pad(b_proj.astype(jnp.float32), (0, Vp - V)).reshape(1, Vp)

    return dict(gate_table=gate_table, whh_t=whh_t, wproj_t=wproj_t,
                bproj=bproj, H=H, V=V, Gp=Gp, Vp=Vp)


def char_decoder_forward(input_ids, tables, dec_hidden=None, *,
                         unroll_limit=16):
    """Mirrors CharDecoder.forward.

    input_ids : (L, B) int32
    returns   : scores (L, B, V) f32, (h_n, c_n) each (1, B, H) f32
    """
    L, B = input_ids.shape
    H, V, Gp, Vp = tables["H"], tables["V"], tables["Gp"], tables["Vp"]
    Bp = _round_up(max(B, 8), 8)      # sublane-tile batch padding

    # Embedding lookup + input projection == one gather of the precomputed
    # gate table (replaces the old in-kernel Phase-1 matmul).  Padded batch
    # rows get all-zero gates, so their h/c stay exactly zero.
    xg = jnp.take(tables["gate_table"], input_ids, axis=0)      # (L, B, Gp)
    xg = jnp.pad(xg, ((0, 0), (0, Bp - B), (0, 0))).reshape(L * Bp, Gp)

    if dec_hidden is None:
        h0 = jnp.zeros((B, H), jnp.float32)
        c0 = jnp.zeros((B, H), jnp.float32)
    else:
        h0 = dec_hidden[0][0].astype(jnp.float32)
        c0 = dec_hidden[1][0].astype(jnp.float32)
    h0 = jnp.pad(h0, ((0, Bp - B), (0, 0)))                     # (Bp, H)
    c0 = jnp.pad(c0, ((0, Bp - B), (0, 0)))

    kernel = _make_char_decoder_kernel(L, Bp, H, unroll=(L <= unroll_limit))

    # Right-sized VMEM limit: gridless call, footprint = resident operands +
    # outputs + scratch, with 2x headroom for in-kernel temporaries.
    operands = (xg, h0, c0, tables["whh_t"], tables["wproj_t"],
                tables["bproj"])
    resident = (sum(o.size * o.dtype.itemsize for o in operands)
                + L * Bp * Vp * 4 + 2 * Bp * H * 4       # outputs
                + L * Bp * H * 4)                         # h_t scratch
    vmem_limit = int(min(128 * 1024 * 1024,
                         max(4 * 1024 * 1024, 2 * resident)))

    scores_flat, h_n, c_n = pl.pallas_call(
        kernel,
        out_shape=(
            jax.ShapeDtypeStruct((L * Bp, Vp), jnp.float32),   # scores (flat)
            jax.ShapeDtypeStruct((Bp, H), jnp.float32),        # h_n
            jax.ShapeDtypeStruct((Bp, H), jnp.float32),        # c_n
        ),
        scratch_shapes=[pltpu.VMEM((L * Bp, H), jnp.float32)],  # all h_t
        compiler_params=pltpu.CompilerParams(vmem_limit_bytes=vmem_limit),
    )(xg, h0, c0, tables["whh_t"], tables["wproj_t"], tables["bproj"])

    scores = scores_flat.reshape(L, Bp, Vp)[:, :B, :V]
    return scores, (h_n[:B][None], c_n[:B][None])


def _reference_forward(input_ids, params, dec_hidden=None):
    """Pure-JAX reference (lax.scan LSTM) for correctness checking."""
    emb, w_ih, w_hh, b_ih, b_hh, w_proj, b_proj = params
    H = w_hh.shape[1]
    x = jnp.take(emb, input_ids, axis=0)
    B = input_ids.shape[1]
    if dec_hidden is None:
        h0 = jnp.zeros((B, H), jnp.float32)
        c0 = jnp.zeros((B, H), jnp.float32)
    else:
        h0, c0 = dec_hidden[0][0], dec_hidden[1][0]

    def step(carry, x_t):
        h, c = carry
        gates = x_t @ w_ih.T + h @ w_hh.T + b_ih + b_hh
        i_g = jax.nn.sigmoid(gates[:, 0 * H:1 * H])
        f_g = jax.nn.sigmoid(gates[:, 1 * H:2 * H])
        g_g = jnp.tanh(gates[:, 2 * H:3 * H])
        o_g = jax.nn.sigmoid(gates[:, 3 * H:4 * H])
        c_new = f_g * c + i_g * g_g
        h_new = o_g * jnp.tanh(c_new)
        return (h_new, c_new), h_new

    (h_n, c_n), outs = lax.scan(step, (h0, c0), x)
    scores = outs @ w_proj.T + b_proj
    return scores, (h_n[None], c_n[None])


def init_params(key, vocab_size, char_embedding_size, hidden_size, pad_idx=0):
    """Deterministic synthetic params matching the PyTorch module's shapes."""
    ks = jax.random.split(key, 7)
    bound = 1.0 / jnp.sqrt(hidden_size)
    emb = jax.random.normal(ks[0], (vocab_size, char_embedding_size),
                            jnp.float32)
    emb = emb.at[pad_idx].set(0.0)  # padding_idx row zeroed
    w_ih = jax.random.uniform(ks[1], (4 * hidden_size, char_embedding_size),
                              jnp.float32, -bound, bound)
    w_hh = jax.random.uniform(ks[2], (4 * hidden_size, hidden_size),
                              jnp.float32, -bound, bound)
    b_ih = jax.random.uniform(ks[3], (4 * hidden_size,), jnp.float32,
                              -bound, bound)
    b_hh = jax.random.uniform(ks[4], (4 * hidden_size,), jnp.float32,
                              -bound, bound)
    w_proj = jax.random.uniform(ks[5], (vocab_size, hidden_size), jnp.float32,
                                -bound, bound)
    b_proj = jax.random.uniform(ks[6], (vocab_size,), jnp.float32,
                                -bound, bound)
    return emb, w_ih, w_hh, b_ih, b_hh, w_proj, b_proj


if __name__ == "__main__":
    # Small shapes consistent with the module: length=8, batch=4,
    # char_embedding_size=50, hidden_size=32, char vocab size=30.
    L, B, E, H, V = 8, 4, 50, 32, 30

    key = jax.random.PRNGKey(0)
    kp, ki, kh, kc = jax.random.split(key, 4)
    params = init_params(kp, V, E, H, pad_idx=0)
    tables = precompute_char_decoder_tables(params)   # one-time packing

    input_ids = jax.random.randint(ki, (L, B), 0, V, dtype=jnp.int32)
    h0 = jax.random.normal(kh, (1, B, H), jnp.float32)
    c0 = jax.random.normal(kc, (1, B, H), jnp.float32)

    # --- with an initial decoder state ---
    scores, (h_n, c_n) = char_decoder_forward(input_ids, tables,
                                              dec_hidden=(h0, c0))
    jax.block_until_ready((scores, h_n, c_n))

    ref_scores, (ref_h, ref_c) = _reference_forward(input_ids, params,
                                                    dec_hidden=(h0, c0))
    assert scores.shape == (L, B, V)
    assert h_n.shape == (1, B, H) and c_n.shape == (1, B, H)
    # bf16 MXU inputs (W_hh / W_proj / h) => looser tolerance than pure f32.
    tol = dict(atol=5e-2, rtol=5e-2)
    assert jnp.allclose(scores, ref_scores, **tol)
    assert jnp.allclose(h_n, ref_h, **tol)
    assert jnp.allclose(c_n, ref_c, **tol)

    # --- default (zero) initial state path ---
    scores0, (h_n0, c_n0) = char_decoder_forward(input_ids, tables)
    jax.block_until_ready((scores0, h_n0, c_n0))
    ref_scores0, (ref_h0, ref_c0) = _reference_forward(input_ids, params)
    assert jnp.allclose(scores0, ref_scores0, **tol)
    assert jnp.allclose(h_n0, ref_h0, **tol)
    assert jnp.allclose(c_n0, ref_c0, **tol)

    print("KERNEL_OK")
</pallas_src>

<mosaic_0001>
module attributes {stable_mosaic.version = 11 : i64} {
  func.func @kernel(%arg0: memref<64x128xf32, #tpu.memory_space<vmem>>, %arg1: memref<8x32xf32, #tpu.memory_space<vmem>>, %arg2: memref<8x32xf32, #tpu.memory_space<vmem>>, %arg3: memref<32x128xbf16, #tpu.memory_space<vmem>>, %arg4: memref<32x128xbf16, #tpu.memory_space<vmem>>, %arg5: memref<1x128xf32, #tpu.memory_space<vmem>>, %arg6: memref<64x128xf32, #tpu.memory_space<vmem>>, %arg7: memref<8x32xf32, #tpu.memory_space<vmem>>, %arg8: memref<8x32xf32, #tpu.memory_space<vmem>>, %arg9: memref<64x32xf32, #tpu.memory_space<vmem>>) attributes {dimension_semantics = [], scalar_prefetch = 0 : i64, scratch_operands = 1 : i64, tpu.core_type = #tpu.core_type<tc>} {
    %c0 = arith.constant 0 : index
    %c0_0 = arith.constant 0 : index
    %0 = vector.load %arg3[%c0, %c0_0] : memref<32x128xbf16, #tpu.memory_space<vmem>>, vector<32x128xbf16>
    %c0_1 = arith.constant 0 : index
    %c0_2 = arith.constant 0 : index
    %1 = vector.load %arg1[%c0_1, %c0_2] : memref<8x32xf32, #tpu.memory_space<vmem>>, vector<8x32xf32>
    %c0_3 = arith.constant 0 : index
    %c0_4 = arith.constant 0 : index
    %2 = vector.load %arg2[%c0_3, %c0_4] : memref<8x32xf32, #tpu.memory_space<vmem>>, vector<8x32xf32>
    %c0_5 = arith.constant 0 : index
    %c0_6 = arith.constant 0 : index
    %3 = vector.load %arg0[%c0_5, %c0_6] : memref<64x128xf32, #tpu.memory_space<vmem>>, vector<8x128xf32>
    %4 = arith.truncf %1 : vector<8x32xf32> to vector<8x32xbf16>
    %cst = arith.constant dense<0.000000e+00> : vector<8x128xf32>
    %5 = tpu.matmul %4, %0, %cst {dimension_numbers = #tpu.dot_dimension_numbers<[1], [0], [0], [1], [0, 0, 1, 1], [], []>} : vector<8x32xbf16>, vector<32x128xbf16>, vector<8x128xf32> -> vector<8x128xf32>
    %6 = arith.addf %3, %5 : vector<8x128xf32>
    %7 = vector.extract_strided_slice %6 {offsets = [0, 0], sizes = [8, 32], strides = [1, 1]} : vector<8x128xf32> to vector<8x32xf32>
    %8 = arith.negf %7 : vector<8x32xf32>
    %9 = math.exp %8 : vector<8x32xf32>
    %cst_7 = arith.constant 1.000000e+00 : f32
    %10 = vector.broadcast %cst_7 : f32 to vector<8x32xf32>
    %11 = arith.addf %10, %9 : vector<8x32xf32>
    %12 = arith.divf %10, %11 : vector<8x32xf32>
    %13 = vector.extract_strided_slice %6 {offsets = [0, 32], sizes = [8, 32], strides = [1, 1]} : vector<8x128xf32> to vector<8x32xf32>
    %14 = arith.negf %13 : vector<8x32xf32>
    %15 = math.exp %14 : vector<8x32xf32>
    %cst_8 = arith.constant 1.000000e+00 : f32
    %16 = vector.broadcast %cst_8 : f32 to vector<8x32xf32>
    %17 = arith.addf %16, %15 : vector<8x32xf32>
    %18 = arith.divf %16, %17 : vector<8x32xf32>
    %19 = vector.extract_strided_slice %6 {offsets = [0, 64], sizes = [8, 32], strides = [1, 1]} : vector<8x128xf32> to vector<8x32xf32>
    %20 = math.tanh %19 : vector<8x32xf32>
    %21 = vector.extract_strided_slice %6 {offsets = [0, 96], sizes = [8, 32], strides = [1, 1]} : vector<8x128xf32> to vector<8x32xf32>
    %22 = arith.negf %21 : vector<8x32xf32>
    %23 = math.exp %22 : vector<8x32xf32>
    %cst_9 = arith.constant 1.000000e+00 : f32
    %24 = vector.broadcast %cst_9 : f32 to vector<8x32xf32>
    %25 = arith.addf %24, %23 : vector<8x32xf32>
    %26 = arith.divf %24, %25 : vector<8x32xf32>
    %27 = arith.mulf %18, %2 : vector<8x32xf32>
    %28 = arith.mulf %12, %20 : vector<8x32xf32>
    %29 = arith.addf %27, %28 : vector<8x32xf32>
    %30 = math.tanh %29 : vector<8x32xf32>
    %31 = arith.mulf %26, %30 : vector<8x32xf32>
    %c0_10 = arith.constant 0 : index
    %c0_11 = arith.constant 0 : index
    %32 = vector.load %arg9[%c0_10, %c0_11] : memref<64x32xf32, #tpu.memory_space<vmem>>, vector<8x32xf32>
    tpu.vector_store %arg9[%c0_10, %c0_11], %31 {strides = array<i32>} : memref<64x32xf32, #tpu.memory_space<vmem>>, vector<8x32xf32>,
    %c8 = arith.constant 8 : index
    %c0_12 = arith.constant 0 : index
    %33 = vector.load %arg0[%c8, %c0_12] : memref<64x128xf32, #tpu.memory_space<vmem>>, vector<8x128xf32>
    %34 = arith.truncf %31 : vector<8x32xf32> to vector<8x32xbf16>
    %cst_13 = arith.constant dense<0.000000e+00> : vector<8x128xf32>
    %35 = tpu.matmul %34, %0, %cst_13 {dimension_numbers = #tpu.dot_dimension_numbers<[1], [0], [0], [1], [0, 0, 1, 1], [], []>} : vector<8x32xbf16>, vector<32x128xbf16>, vector<8x128xf32> -> vector<8x128xf32>
    %36 = arith.addf %33, %35 : vector<8x128xf32>
    %37 = vector.extract_strided_slice %36 {offsets = [0, 0], sizes = [8, 32], strides = [1, 1]} : vector<8x128xf32> to vector<8x32xf32>
    %38 = arith.negf %37 : vector<8x32xf32>
    %39 = math.exp %38 : vector<8x32xf32>
    %cst_14 = arith.constant 1.000000e+00 : f32
    %40 = vector.broadcast %cst_14 : f32 to vector<8x32xf32>
    %41 = arith.addf %40, %39 : vector<8x32xf32>
    %42 = arith.divf %40, %41 : vector<8x32xf32>
    %43 = vector.extract_strided_slice %36 {offsets = [0, 32], sizes = [8, 32], strides = [1, 1]} : vector<8x128xf32> to vector<8x32xf32>
    %44 = arith.negf %43 : vector<8x32xf32>
    %45 = math.exp %44 : vector<8x32xf32>
    %cst_15 = arith.constant 1.000000e+00 : f32
    %46 = vector.broadcast %cst_15 : f32 to vector<8x32xf32>
    %47 = arith.addf %46, %45 : vector<8x32xf32>
    %48 = arith.divf %46, %47 : vector<8x32xf32>
    %49 = vector.extract_strided_slice %36 {offsets = [0, 64], sizes = [8, 32], strides = [1, 1]} : vector<8x128xf32> to vector<8x32xf32>
    %50 = math.tanh %49 : vector<8x32xf32>
    %51 = vector.extract_strided_slice %36 {offsets = [0, 96], sizes = [8, 32], strides = [1, 1]} : vector<8x128xf32> to vector<8x32xf32>
    %52 = arith.negf %51 : vector<8x32xf32>
    %53 = math.exp %52 : vector<8x32xf32>
    %cst_16 = arith.constant 1.000000e+00 : f32
    %54 = vector.broadcast %cst_16 : f32 to vector<8x32xf32>
    %55 = arith.addf %54, %53 : vector<8x32xf32>
    %56 = arith.divf %54, %55 : vector<8x32xf32>
    %57 = arith.mulf %48, %29 : vector<8x32xf32>
    %58 = arith.mulf %42, %50 : vector<8x32xf32>
    %59 = arith.addf %57, %58 : vector<8x32xf32>
    %60 = math.tanh %59 : vector<8x32xf32>
    %61 = arith.mulf %56, %60 : vector<8x32xf32>
    %c8_17 = arith.constant 8 : index
    %c0_18 = arith.constant 0 : index
    %62 = vector.load %arg9[%c8_17, %c0_18] : memref<64x32xf32, #tpu.memory_space<vmem>>, vector<8x32xf32>
    tpu.vector_store %arg9[%c8_17, %c0_18], %61 {strides = array<i32>} : memref<64x32xf32, #tpu.memory_space<vmem>>, vector<8x32xf32>,
    %c16 = arith.constant 16 : index
    %c0_19 = arith.constant 0 : index
    %63 = vector.load %arg0[%c16, %c0_19] : memref<64x128xf32, #tpu.memory_space<vmem>>, vector<8x128xf32>
    %64 = arith.truncf %61 : vector<8x32xf32> to vector<8x32xbf16>
    %cst_20 = arith.constant dense<0.000000e+00> : vector<8x128xf32>
    %65 = tpu.matmul %64, %0, %cst_20 {dimension_numbers = #tpu.dot_dimension_numbers<[1], [0], [0], [1], [0, 0, 1, 1], [], []>} : vector<8x32xbf16>, vector<32x128xbf16>, vector<8x128xf32> -> vector<8x128xf32>
    %66 = arith.addf %63, %65 : vector<8x128xf32>
    %67 = vector.extract_strided_slice %66 {offsets = [0, 0], sizes = [8, 32], strides = [1, 1]} : vector<8x128xf32> to vector<8x32xf32>
    %68 = arith.negf %67 : vector<8x32xf32>
    %69 = math.exp %68 : vector<8x32xf32>
    %cst_21 = arith.constant 1.000000e+00 : f32
    %70 = vector.broadcast %cst_21 : f32 to vector<8x32xf32>
    %71 = arith.addf %70, %69 : vector<8x32xf32>
    %72 = arith.divf %70, %71 : vector<8x32xf32>
    %73 = vector.extract_strided_slice %66 {offsets = [0, 32], sizes = [8, 32], strides = [1, 1]} : vector<8x128xf32> to vector<8x32xf32>
    %74 = arith.negf %73 : vector<8x32xf32>
    %75 = math.exp %74 : vector<8x32xf32>
    %cst_22 = arith.constant 1.000000e+00 : f32
    %76 = vector.broadcast %cst_22 : f32 to vector<8x32xf32>
    %77 = arith.addf %76, %75 : vector<8x32xf32>
    %78 = arith.divf %76, %77 : vector<8x32xf32>
    %79 = vector.extract_strided_slice %66 {offsets = [0, 64], sizes = [8, 32], strides = [1, 1]} : vector<8x128xf32> to vector<8x32xf32>
    %80 = math.tanh %79 : vector<8x32xf32>
    %81 = vector.extract_strided_slice %66 {offsets = [0, 96], sizes = [8, 32], strides = [1, 1]} : vector<8x128xf32> to vector<8x32xf32>
    %82 = arith.negf %81 : vector<8x32xf32>
    %83 = math.exp %82 : vector<8x32xf32>
    %cst_23 = arith.constant 1.000000e+00 : f32
    %84 = vector.broadcast %cst_23 : f32 to vector<8x32xf32>
    %85 = arith.addf %84, %83 : vector<8x32xf32>
    %86 = arith.divf %84, %85 : vector<8x32xf32>
    %87 = arith.mulf %78, %59 : vector<8x32xf32>
    %88 = arith.mulf %72, %80 : vector<8x32xf32>
    %89 = arith.addf %87, %88 : vector<8x32xf32>
    %90 = math.tanh %89 : vector<8x32xf32>
    %91 = arith.mulf %86, %90 : vector<8x32xf32>
    %c16_24 = arith.constant 16 : index
    %c0_25 = arith.constant 0 : index
    %92 = vector.load %arg9[%c16_24, %c0_25] : memref<64x32xf32, #tpu.memory_space<vmem>>, vector<8x32xf32>
    tpu.vector_store %arg9[%c16_24, %c0_25], %91 {strides = array<i32>} : memref<64x32xf32, #tpu.memory_space<vmem>>, vector<8x32xf32>,
    %c24 = arith.constant 24 : index
    %c0_26 = arith.constant 0 : index
    %93 = vector.load %arg0[%c24, %c0_26] : memref<64x128xf32, #tpu.memory_space<vmem>>, vector<8x128xf32>
    %94 = arith.truncf %91 : vector<8x32xf32> to vector<8x32xbf16>
    %cst_27 = arith.constant dense<0.000000e+00> : vector<8x128xf32>
    %95 = tpu.matmul %94, %0, %cst_27 {dimension_numbers = #tpu.dot_dimension_numbers<[1], [0], [0], [1], [0, 0, 1, 1], [], []>} : vector<8x32xbf16>, vector<32x128xbf16>, vector<8x128xf32> -> vector<8x128xf32>
    %96 = arith.addf %93, %95 : vector<8x128xf32>
    %97 = vector.extract_strided_slice %96 {offsets = [0, 0], sizes = [8, 32], strides = [1, 1]} : vector<8x128xf32> to vector<8x32xf32>
    %98 = arith.negf %97 : vector<8x32xf32>
    %99 = math.exp %98 : vector<8x32xf32>
    %cst_28 = arith.constant 1.000000e+00 : f32
    %100 = vector.broadcast %cst_28 : f32 to vector<8x32xf32>
    %101 = arith.addf %100, %99 : vector<8x32xf32>
    %102 = arith.divf %100, %101 : vector<8x32xf32>
    %103 = vector.extract_strided_slice %96 {offsets = [0, 32], sizes = [8, 32], strides = [1, 1]} : vector<8x128xf32> to vector<8x32xf32>
    %104 = arith.negf %103 : vector<8x32xf32>
    %105 = math.exp %104 : vector<8x32xf32>
    %cst_29 = arith.constant 1.000000e+00 : f32
    %106 = vector.broadcast %cst_29 : f32 to vector<8x32xf32>
    %107 = arith.addf %106, %105 : vector<8x32xf32>
    %108 = arith.divf %106, %107 : vector<8x32xf32>
    %109 = vector.extract_strided_slice %96 {offsets = [0, 64], sizes = [8, 32], strides = [1, 1]} : vector<8x128xf32> to vector<8x32xf32>
    %110 = math.tanh %109 : vector<8x32xf32>
    %111 = vector.extract_strided_slice %96 {offsets = [0, 96], sizes = [8, 32], strides = [1, 1]} : vector<8x128xf32> to vector<8x32xf32>
    %112 = arith.negf %111 : vector<8x32xf32>
    %113 = math.exp %112 : vector<8x32xf32>
    %cst_30 = arith.constant 1.000000e+00 : f32
    %114 = vector.broadcast %cst_30 : f32 to vector<8x32xf32>
    %115 = arith.addf %114, %113 : vector<8x32xf32>
    %116 = arith.divf %114, %115 : vector<8x32xf32>
    %117 = arith.mulf %108, %89 : vector<8x32xf32>
    %118 = arith.mulf %102, %110 : vector<8x32xf32>
    %119 = arith.addf %117, %118 : vector<8x32xf32>
    %120 = math.tanh %119 : vector<8x32xf32>
    %121 = arith.mulf %116, %120 : vector<8x32xf32>
    %c24_31 = arith.constant 24 : index
    %c0_32 = arith.constant 0 : index
    %122 = vector.load %arg9[%c24_31, %c0_32] : memref<64x32xf32, #tpu.memory_space<vmem>>, vector<8x32xf32>
    tpu.vector_store %arg9[%c24_31, %c0_32], %121 {strides = array<i32>} : memref<64x32xf32, #tpu.memory_space<vmem>>, vector<8x32xf32>,
    %c32 = arith.constant 32 : index
    %c0_33 = arith.constant 0 : index
    %123 = vector.load %arg0[%c32, %c0_33] : memref<64x128xf32, #tpu.memory_space<vmem>>, vector<8x128xf32>
    %124 = arith.truncf %121 : vector<8x32xf32> to vector<8x32xbf16>
    %cst_34 = arith.constant dense<0.000000e+00> : vector<8x128xf32>
    %125 = tpu.matmul %124, %0, %cst_34 {dimension_numbers = #tpu.dot_dimension_numbers<[1], [0], [0], [1], [0, 0, 1, 1], [], []>} : vector<8x32xbf16>, vector<32x128xbf16>, vector<8x128xf32> -> vector<8x128xf32>
    %126 = arith.addf %123, %125 : vector<8x128xf32>
    %127 = vector.extract_strided_slice %126 {offsets = [0, 0], sizes = [8, 32], strides = [1, 1]} : vector<8x128xf32> to vector<8x32xf32>
    %128 = arith.negf %127 : vector<8x32xf32>
    %129 = math.exp %128 : vector<8x32xf32>
    %cst_35 = arith.constant 1.000000e+00 : f32
    %130 = vector.broadcast %cst_35 : f32 to vector<8x32xf32>
    %131 = arith.addf %130, %129 : vector<8x32xf32>
    %132 = arith.divf %130, %131 : vector<8x32xf32>
    %133 = vector.extract_strided_slice %126 {offsets = [0, 32], sizes = [8, 32], strides = [1, 1]} : vector<8x128xf32> to vector<8x32xf32>
    %134 = arith.negf %133 : vector<8x32xf32>
    %135 = math.exp %134 : vector<8x32xf32>
    %cst_36 = arith.constant 1.000000e+00 : f32
    %136 = vector.broadcast %cst_36 : f32 to vector<8x32xf32>
    %137 = arith.addf %136, %135 : vector<8x32xf32>
    %138 = arith.divf %136, %137 : vector<8x32xf32>
    %139 = vector.extract_strided_slice %126 {offsets = [0, 64], sizes = [8, 32], strides = [1, 1]} : vector<8x128xf32> to vector<8x32xf32>
    %140 = math.tanh %139 : vector<8x32xf32>
    %141 = vector.extract_strided_slice %126 {offsets = [0, 96], sizes = [8, 32], strides = [1, 1]} : vector<8x128xf32> to vector<8x32xf32>
    %142 = arith.negf %141 : vector<8x32xf32>
    %143 = math.exp %142 : vector<8x32xf32>
    %cst_37 = arith.constant 1.000000e+00 : f32
    %144 = vector.broadcast %cst_37 : f32 to vector<8x32xf32>
    %145 = arith.addf %144, %143 : vector<8x32xf32>
    %146 = arith.divf %144, %145 : vector<8x32xf32>
    %147 = arith.mulf %138, %119 : vector<8x32xf32>
    %148 = arith.mulf %132, %140 : vector<8x32xf32>
    %149 = arith.addf %147, %148 : vector<8x32xf32>
    %150 = math.tanh %149 : vector<8x32xf32>
    %151 = arith.mulf %146, %150 : vector<8x32xf32>
    %c32_38 = arith.constant 32 : index
    %c0_39 = arith.constant 0 : index
    %152 = vector.load %arg9[%c32_38, %c0_39] : memref<64x32xf32, #tpu.memory_space<vmem>>, vector<8x32xf32>
    tpu.vector_store %arg9[%c32_38, %c0_39], %151 {strides = array<i32>} : memref<64x32xf32, #tpu.memory_space<vmem>>, vector<8x32xf32>,
    %c40 = arith.constant 40 : index
    %c0_40 = arith.constant 0 : index
    %153 = vector.load %arg0[%c40, %c0_40] : memref<64x128xf32, #tpu.memory_space<vmem>>, vector<8x128xf32>
    %154 = arith.truncf %151 : vector<8x32xf32> to vector<8x32xbf16>
    %cst_41 = arith.constant dense<0.000000e+00> : vector<8x128xf32>
    %155 = tpu.matmul %154, %0, %cst_41 {dimension_numbers = #tpu.dot_dimension_numbers<[1], [0], [0], [1], [0, 0, 1, 1], [], []>} : vector<8x32xbf16>, vector<32x128xbf16>, vector<8x128xf32> -> vector<8x128xf32>
    %156 = arith.addf %153, %155 : vector<8x128xf32>
    %157 = vector.extract_strided_slice %156 {offsets = [0, 0], sizes = [8, 32], strides = [1, 1]} : vector<8x128xf32> to vector<8x32xf32>
    %158 = arith.negf %157 : vector<8x32xf32>
    %159 = math.exp %158 : vector<8x32xf32>
    %cst_42 = arith.constant 1.000000e+00 : f32
    %160 = vector.broadcast %cst_42 : f32 to vector<8x32xf32>
    %161 = arith.addf %160, %159 : vector<8x32xf32>
    %162 = arith.divf %160, %161 : vector<8x32xf32>
    %163 = vector.extract_strided_slice %156 {offsets = [0, 32], sizes = [8, 32], strides = [1, 1]} : vector<8x128xf32> to vector<8x32xf32>
    %164 = arith.negf %163 : vector<8x32xf32>
    %165 = math.exp %164 : vector<8x32xf32>
    %cst_43 = arith.constant 1.000000e+00 : f32
    %166 = vector.broadcast %cst_43 : f32 to vector<8x32xf32>
    %167 = arith.addf %166, %165 : vector<8x32xf32>
    %168 = arith.divf %166, %167 : vector<8x32xf32>
    %169 = vector.extract_strided_slice %156 {offsets = [0, 64], sizes = [8, 32], strides = [1, 1]} : vector<8x128xf32> to vector<8x32xf32>
    %170 = math.tanh %169 : vector<8x32xf32>
    %171 = vector.extract_strided_slice %156 {offsets = [0, 96], sizes = [8, 32], strides = [1, 1]} : vector<8x128xf32> to vector<8x32xf32>
    %172 = arith.negf %171 : vector<8x32xf32>
    %173 = math.exp %172 : vector<8x32xf32>
    %cst_44 = arith.constant 1.000000e+00 : f32
    %174 = vector.broadcast %cst_44 : f32 to vector<8x32xf32>
    %175 = arith.addf %174, %173 : vector<8x32xf32>
    %176 = arith.divf %174, %175 : vector<8x32xf32>
    %177 = arith.mulf %168, %149 : vector<8x32xf32>
    %178 = arith.mulf %162, %170 : vector<8x32xf32>
    %179 = arith.addf %177, %178 : vector<8x32xf32>
    %180 = math.tanh %179 : vector<8x32xf32>
    %181 = arith.mulf %176, %180 : vector<8x32xf32>
    %c40_45 = arith.constant 40 : index
    %c0_46 = arith.constant 0 : index
    %182 = vector.load %arg9[%c40_45, %c0_46] : memref<64x32xf32, #tpu.memory_space<vmem>>, vector<8x32xf32>
    tpu.vector_store %arg9[%c40_45, %c0_46], %181 {strides = array<i32>} : memref<64x32xf32, #tpu.memory_space<vmem>>, vector<8x32xf32>,
    %c48 = arith.constant 48 : index
    %c0_47 = arith.constant 0 : index
    %183 = vector.load %arg0[%c48, %c0_47] : memref<64x128xf32, #tpu.memory_space<vmem>>, vector<8x128xf32>
    %184 = arith.truncf %181 : vector<8x32xf32> to vector<8x32xbf16>
    %cst_48 = arith.constant dense<0.000000e+00> : vector<8x128xf32>
    %185 = tpu.matmul %184, %0, %cst_48 {dimension_numbers = #tpu.dot_dimension_numbers<[1], [0], [0], [1], [0, 0, 1, 1], [], []>} : vector<8x32xbf16>, vector<32x128xbf16>, vector<8x128xf32> -> vector<8x128xf32>
    %186 = arith.addf %183, %185 : vector<8x128xf32>
    %187 = vector.extract_strided_slice %186 {offsets = [0, 0], sizes = [8, 32], strides = [1, 1]} : vector<8x128xf32> to vector<8x32xf32>
    %188 = arith.negf %187 : vector<8x32xf32>
    %189 = math.exp %188 : vector<8x32xf32>
    %cst_49 = arith.constant 1.000000e+00 : f32
    %190 = vector.broadcast %cst_49 : f32 to vector<8x32xf32>
    %191 = arith.addf %190, %189 : vector<8x32xf32>
    %192 = arith.divf %190, %191 : vector<8x32xf32>
    %193 = vector.extract_strided_slice %186 {offsets = [0, 32], sizes = [8, 32], strides = [1, 1]} : vector<8x128xf32> to vector<8x32xf32>
    %194 = arith.negf %193 : vector<8x32xf32>
    %195 = math.exp %194 : vector<8x32xf32>
    %cst_50 = arith.constant 1.000000e+00 : f32
    %196 = vector.broadcast %cst_50 : f32 to vector<8x32xf32>
    %197 = arith.addf %196, %195 : vector<8x32xf32>
    %198 = arith.divf %196, %197 : vector<8x32xf32>
    %199 = vector.extract_strided_slice %186 {offsets = [0, 64], sizes = [8, 32], strides = [1, 1]} : vector<8x128xf32> to vector<8x32xf32>
    %200 = math.tanh %199 : vector<8x32xf32>
    %201 = vector.extract_strided_slice %186 {offsets = [0, 96], sizes = [8, 32], strides = [1, 1]} : vector<8x128xf32> to vector<8x32xf32>
    %202 = arith.negf %201 : vector<8x32xf32>
    %203 = math.exp %202 : vector<8x32xf32>
    %cst_51 = arith.constant 1.000000e+00 : f32
    %204 = vector.broadcast %cst_51 : f32 to vector<8x32xf32>
    %205 = arith.addf %204, %203 : vector<8x32xf32>
    %206 = arith.divf %204, %205 : vector<8x32xf32>
    %207 = arith.mulf %198, %179 : vector<8x32xf32>
    %208 = arith.mulf %192, %200 : vector<8x32xf32>
    %209 = arith.addf %207, %208 : vector<8x32xf32>
    %210 = math.tanh %209 : vector<8x32xf32>
    %211 = arith.mulf %206, %210 : vector<8x32xf32>
    %c48_52 = arith.constant 48 : index
    %c0_53 = arith.constant 0 : index
    %212 = vector.load %arg9[%c48_52, %c0_53] : memref<64x32xf32, #tpu.memory_space<vmem>>, vector<8x32xf32>
    tpu.vector_store %arg9[%c48_52, %c0_53], %211 {strides = array<i32>} : memref<64x32xf32, #tpu.memory_space<vmem>>, vector<8x32xf32>,
    %c56 = arith.constant 56 : index
    %c0_54 = arith.constant 0 : index
    %213 = vector.load %arg0[%c56, %c0_54] : memref<64x128xf32, #tpu.memory_space<vmem>>, vector<8x128xf32>
    %214 = arith.truncf %211 : vector<8x32xf32> to vector<8x32xbf16>
    %cst_55 = arith.constant dense<0.000000e+00> : vector<8x128xf32>
    %215 = tpu.matmul %214, %0, %cst_55 {dimension_numbers = #tpu.dot_dimension_numbers<[1], [0], [0], [1], [0, 0, 1, 1], [], []>} : vector<8x32xbf16>, vector<32x128xbf16>, vector<8x128xf32> -> vector<8x128xf32>
    %216 = arith.addf %213, %215 : vector<8x128xf32>
    %217 = vector.extract_strided_slice %216 {offsets = [0, 0], sizes = [8, 32], strides = [1, 1]} : vector<8x128xf32> to vector<8x32xf32>
    %218 = arith.negf %217 : vector<8x32xf32>
    %219 = math.exp %218 : vector<8x32xf32>
    %cst_56 = arith.constant 1.000000e+00 : f32
    %220 = vector.broadcast %cst_56 : f32 to vector<8x32xf32>
    %221 = arith.addf %220, %219 : vector<8x32xf32>
    %222 = arith.divf %220, %221 : vector<8x32xf32>
    %223 = vector.extract_strided_slice %216 {offsets = [0, 32], sizes = [8, 32], strides = [1, 1]} : vector<8x128xf32> to vector<8x32xf32>
    %224 = arith.negf %223 : vector<8x32xf32>
    %225 = math.exp %224 : vector<8x32xf32>
    %cst_57 = arith.constant 1.000000e+00 : f32
    %226 = vector.broadcast %cst_57 : f32 to vector<8x32xf32>
    %227 = arith.addf %226, %225 : vector<8x32xf32>
    %228 = arith.divf %226, %227 : vector<8x32xf32>
    %229 = vector.extract_strided_slice %216 {offsets = [0, 64], sizes = [8, 32], strides = [1, 1]} : vector<8x128xf32> to vector<8x32xf32>
    %230 = math.tanh %229 : vector<8x32xf32>
    %231 = vector.extract_strided_slice %216 {offsets = [0, 96], sizes = [8, 32], strides = [1, 1]} : vector<8x128xf32> to vector<8x32xf32>
    %232 = arith.negf %231 : vector<8x32xf32>
    %233 = math.exp %232 : vector<8x32xf32>
    %cst_58 = arith.constant 1.000000e+00 : f32
    %234 = vector.broadcast %cst_58 : f32 to vector<8x32xf32>
    %235 = arith.addf %234, %233 : vector<8x32xf32>
    %236 = arith.divf %234, %235 : vector<8x32xf32>
    %237 = arith.mulf %228, %209 : vector<8x32xf32>
    %238 = arith.mulf %222, %230 : vector<8x32xf32>
    %239 = arith.addf %237, %238 : vector<8x32xf32>
    %240 = math.tanh %239 : vector<8x32xf32>
    %241 = arith.mulf %236, %240 : vector<8x32xf32>
    %c56_59 = arith.constant 56 : index
    %c0_60 = arith.constant 0 : index
    %242 = vector.load %arg9[%c56_59, %c0_60] : memref<64x32xf32, #tpu.memory_space<vmem>>, vector<8x32xf32>
    tpu.vector_store %arg9[%c56_59, %c0_60], %241 {strides = array<i32>} : memref<64x32xf32, #tpu.memory_space<vmem>>, vector<8x32xf32>,
    %c0_61 = arith.constant 0 : index
    %c0_62 = arith.constant 0 : index
    %243 = vector.load %arg7[%c0_61, %c0_62] : memref<8x32xf32, #tpu.memory_space<vmem>>, vector<8x32xf32>
    tpu.vector_store %arg7[%c0_61, %c0_62], %241 {strides = array<i32>} : memref<8x32xf32, #tpu.memory_space<vmem>>, vector<8x32xf32>,
    %c0_63 = arith.constant 0 : index
    %c0_64 = arith.constant 0 : index
    %244 = vector.load %arg8[%c0_63, %c0_64] : memref<8x32xf32, #tpu.memory_space<vmem>>, vector<8x32xf32>
    tpu.vector_store %arg8[%c0_63, %c0_64], %239 {strides = array<i32>} : memref<8x32xf32, #tpu.memory_space<vmem>>, vector<8x32xf32>,
    %c0_65 = arith.constant 0 : index
    %c0_66 = arith.constant 0 : index
    %245 = vector.load %arg9[%c0_65, %c0_66] : memref<64x32xf32, #tpu.memory_space<vmem>>, vector<64x32xf32>
    %246 = arith.truncf %245 : vector<64x32xf32> to vector<64x32xbf16>
    %c0_67 = arith.constant 0 : index
    %c0_68 = arith.constant 0 : index
    %247 = vector.load %arg4[%c0_67, %c0_68] : memref<32x128xbf16, #tpu.memory_space<vmem>>, vector<32x128xbf16>
    %cst_69 = arith.constant dense<0.000000e+00> : vector<64x128xf32>
    %248 = tpu.matmul %246, %247, %cst_69 {dimension_numbers = #tpu.dot_dimension_numbers<[1], [0], [0], [1], [0, 0, 1, 1], [], []>} : vector<64x32xbf16>, vector<32x128xbf16>, vector<64x128xf32> -> vector<64x128xf32>
    %c0_70 = arith.constant 0 : index
    %c0_71 = arith.constant 0 : index
    %249 = vector.load %arg5[%c0_70, %c0_71] : memref<1x128xf32, #tpu.memory_space<vmem>>, vector<1x128xf32>
    %250 = vector.broadcast %249 : vector<1x128xf32> to vector<64x128xf32>
    %251 = arith.addf %248, %250 : vector<64x128xf32>
    %c0_72 = arith.constant 0 : index
    %c0_73 = arith.constant 0 : index
    %252 = vector.load %arg6[%c0_72, %c0_73] : memref<64x128xf32, #tpu.memory_space<vmem>>, vector<64x128xf32>
    tpu.vector_store %arg6[%c0_72, %c0_73], %251 {strides = array<i32>} : memref<64x128xf32, #tpu.memory_space<vmem>>, vector<64x128xf32>,
    return
  }
}

</mosaic_0001>

<llo_original>
// kernel: tpu_custom_call.1
$region0: #{tpu_custom_call.1}
  #allocation0 [shape = 'u32[]', space=smem, size = 0x4, offset = 0x4, fixed_abs, tag = 'smem constant byte address 0x4 - core index']
  #allocation1 [shape = 'u32[144,128]{1,0:T(1,128)}', space=vmem, size = 0x12000, scoped, tag = 'internal scratch']
  #allocation2 [shape = 'f32[64,32]{1,0:T(8,128)}', space=vmem, size = 0x8000, scoped, tag = 'scratch operand']
  %s0 = inlined_call_operand.hbm [shape: f32[64,128], index: 0, kind: input, shape index: {}]
  %s1 = inlined_call_operand.hbm [shape: f32[8,32], index: 1, kind: input, shape index: {}]
  %s2 = inlined_call_operand.hbm [shape: f32[8,32], index: 2, kind: input, shape index: {}]
  %s3 = inlined_call_operand.hbm [shape: bf16[32,128], index: 3, kind: input, shape index: {}]
  %s4 = inlined_call_operand.hbm [shape: bf16[32,128], index: 4, kind: input, shape index: {}]
  %s5 = inlined_call_operand.vmem [shape: f32[1,128], index: 5, kind: input, shape index: {}]
  %s6 = inlined_call_operand.hbm [shape: f32[64,128], index: 6, kind: output, shape index: {0}]
  %s7 = inlined_call_operand.hbm [shape: f32[8,32], index: 7, kind: output, shape index: {1}]
  %s8 = inlined_call_operand.hbm [shape: f32[8,32], index: 8, kind: output, shape index: {2}]
  %9 = xla_tuple %s6, %s7, %s8
  %s10 = sld [smem:[#allocation0]]
  $region70: #{tpu_custom_call.1} parent=0
    _
  %s12 = ssub.s32 1, %s10
  %s13 = scalar_select 0, %s12, %s10
  $region1: #{tpu_custom_call.1} parent=0
    #allocation3 [shape = 'u8[32768]{0}', space=vmem, size = 0x8000, scoped, tag = 'input window, operand 0, single buffered']
    #allocation4 [shape = 's32[1]{0}', space=sflag, size = 0x4, scoped, tag = 'scoped memory for tpu_custom_call.1']
    #allocation5 [shape = 's32[1]{0}', space=sflag, size = 0x4, scoped, tag = 'scoped memory for tpu_custom_call.1']
    #allocation6 [shape = 'u8[4096]{0}', space=vmem, size = 0x1000, scoped, tag = 'input window, operand 1, single buffered']
    #allocation7 [shape = 's32[1]{0}', space=sflag, size = 0x4, scoped, tag = 'scoped memory for tpu_custom_call.1']
    #allocation8 [shape = 'u8[4096]{0}', space=vmem, size = 0x1000, scoped, tag = 'input window, operand 2, single buffered']
    #allocation9 [shape = 'u8[8192]{0}', space=vmem, size = 0x2000, scoped, tag = 'input window, operand 3, single buffered']
    #allocation10 [shape = 's32[1]{0}', space=sflag, size = 0x4, scoped, tag = 'scoped memory for tpu_custom_call.1']
    #allocation11 [shape = 'u8[8192]{0}', space=vmem, size = 0x2000, scoped, tag = 'input window, operand 4, single buffered']
    #allocation12 [shape = 'u8[32768]{0}', space=vmem, size = 0x8000, scoped, tag = 'output window, operand 0, single buffered']
    #allocation13 [shape = 'u8[4096]{0}', space=vmem, size = 0x1000, scoped, tag = 'output window, operand 1, single buffered']
    #allocation14 [shape = 's32[1]{0}', space=sflag, size = 0x4, scoped, tag = 'scoped memory for tpu_custom_call.1']
    #allocation15 [shape = 'u8[4096]{0}', space=vmem, size = 0x1000, scoped, tag = 'output window, operand 2, single buffered']
    %14 = vsyncpa [#allocation4], 0
    %15 = vsyncpa [#allocation7], 0
    %16 = vsyncpa [#allocation10], 0
    %17 = vsyncpa [#allocation5], 0
    %18 = vsyncpa [#allocation14], 0
    // Predicated region
    $region2: #{tpu_custom_call.1} parent=1 // pred_check
      _
    $region3: #{tpu_custom_call.1} parent=1 // pred_check_branch
      %20 = sbr.rel (0) target = $region5
    $region4: #{tpu_custom_call.1} parent=1 // pred_region
      %s22 = ssub.s32 1024, 1024
      %23 = vsyncadd [#allocation4], %s22
      %s24 = sshll.u32 [#allocation3], 4
      %s25 = int_to_ptr.vmem [resolvable:$true] %s24
      %30 = dma.hbm_to_vmem [thread:$0]  %s0, 1024, %s25, [#allocation4], 128, 128, 8
    $region5: #{tpu_custom_call.1} parent=1 // pred_fallthru
      _
    // Predicated region
    $region6: #{tpu_custom_call.1} parent=1 // pred_check
      _
    $region7: #{tpu_custom_call.1} parent=1 // pred_check_branch
      %32 = sbr.rel (0) target = $region9
    $region8: #{tpu_custom_call.1} parent=1 // pred_region
      %s34 = ssub.s32 128, 128
      %35 = vsyncadd [#allocation7], %s34
      %s37 = sshll.u32 [#allocation6], 4
      %s38 = int_to_ptr.vmem [resolvable:$true] %s37
      %40 = dma.hbm_to_vmem [thread:$0]  %s1, 128, %s38, [#allocation7]
    $region9: #{tpu_custom_call.1} parent=1 // pred_fallthru
      _
    // Predicated region
    $region10: #{tpu_custom_call.1} parent=1 // pred_check
      _
    $region11: #{tpu_custom_call.1} parent=1 // pred_check_branch
      %42 = sbr.rel (0) target = $region13
    $region12: #{tpu_custom_call.1} parent=1 // pred_region
      %s44 = ssub.s32 128, 128
      %45 = vsyncadd [#allocation7], %s44
      %s47 = sshll.u32 [#allocation8], 4
      %s48 = int_to_ptr.vmem [resolvable:$true] %s47
      %50 = dma.hbm_to_vmem [thread:$0]  %s2, 128, %s48, [#allocation7]
    $region13: #{tpu_custom_call.1} parent=1 // pred_fallthru
      _
    // Predicated region
    $region14: #{tpu_custom_call.1} parent=1 // pred_check
      _
    $region15: #{tpu_custom_call.1} parent=1 // pred_check_branch
      %52 = sbr.rel (0) target = $region17
    $region16: #{tpu_custom_call.1} parent=1 // pred_region
      %s54 = ssub.s32 256, 256
      %55 = vsyncadd [#allocation10], %s54
      %s56 = sshll.u32 [#allocation9], 4
      %s57 = int_to_ptr.vmem [resolvable:$true] %s56
      %62 = dma.hbm_to_vmem [thread:$0]  %s3, 256, %s57, [#allocation10], 64, 64, 4
    $region17: #{tpu_custom_call.1} parent=1 // pred_fallthru
      _
    // Predicated region
    $region18: #{tpu_custom_call.1} parent=1 // pred_check
      _
    $region19: #{tpu_custom_call.1} parent=1 // pred_check_branch
      %64 = sbr.rel (0) target = $region21
    $region20: #{tpu_custom_call.1} parent=1 // pred_region
      %s66 = ssub.s32 256, 256
      %67 = vsyncadd [#allocation10], %s66
      %s68 = sshll.u32 [#allocation11], 4
      %s69 = int_to_ptr.vmem [resolvable:$true] %s68
      %74 = dma.hbm_to_vmem [thread:$0]  %s4, 256, %s69, [#allocation10], 64, 64, 4
    $region21: #{tpu_custom_call.1} parent=1 // pred_fallthru
      _
    // Predicated region
    $region22: #{tpu_custom_call.1} parent=1 // pred_check
      _
    $region23: #{tpu_custom_call.1} parent=1 // pred_check_branch
      %76 = sbr.rel (0) target = $region25
    $region24: #{tpu_custom_call.1} parent=1 // pred_region
      _
    $region25: #{tpu_custom_call.1} parent=1 // pred_fallthru
      _
    // Predicated region
    $region26: #{tpu_custom_call.1} parent=1 // pred_check
      _
    $region27: #{tpu_custom_call.1} parent=1 // pred_check_branch
      %78 = sbr.rel (0) target = $region29
    $region28: #{tpu_custom_call.1} parent=1 // pred_region
      %79 = dma.done [#allocation4], 1024
    $region29: #{tpu_custom_call.1} parent=1 // pred_fallthru
      _
    // Predicated region
    $region30: #{tpu_custom_call.1} parent=1 // pred_check
      _
    $region31: #{tpu_custom_call.1} parent=1 // pred_check_branch
      %81 = sbr.rel (0) target = $region33
    $region32: #{tpu_custom_call.1} parent=1 // pred_region
      %82 = dma.done [#allocation7], 128
    $region33: #{tpu_custom_call.1} parent=1 // pred_fallthru
      _
    // Predicated region
    $region34: #{tpu_custom_call.1} parent=1 // pred_check
      _
    $region35: #{tpu_custom_call.1} parent=1 // pred_check_branch
      %84 = sbr.rel (0) target = $region37
    $region36: #{tpu_custom_call.1} parent=1 // pred_region
      %85 = dma.done [#allocation7], 128
    $region37: #{tpu_custom_call.1} parent=1 // pred_fallthru
      _
    // Predicated region
    $region38: #{tpu_custom_call.1} parent=1 // pred_check
      _
    $region39: #{tpu_custom_call.1} parent=1 // pred_check_branch
      %87 = sbr.rel (0) target = $region41
    $region40: #{tpu_custom_call.1} parent=1 // pred_region
      %88 = dma.done [#allocation10], 256
    $region41: #{tpu_custom_call.1} parent=1 // pred_fallthru
      _
    // Predicated region
    $region42: #{tpu_custom_call.1} parent=1 // pred_check
      _
    $region43: #{tpu_custom_call.1} parent=1 // pred_check_branch
      %90 = sbr.rel (0) target = $region45
    $region44: #{tpu_custom_call.1} parent=1 // pred_region
      %91 = dma.done [#allocation10], 256
    $region45: #{tpu_custom_call.1} parent=1 // pred_fallthru
      _
    %v93 = vld [vmem:[#allocation9] sm:$0xf]
    %v94 = vld [vmem:[#allocation9 + $0x4] sm:$0xf]
    %v95 = vld [vmem:[#allocation9 + $0x8] sm:$0xf]
    %v96 = vld [vmem:[#allocation9 + $0xc] sm:$0xf]
    %v97 = vld [vmem:[#allocation6] sm:$0xff]
    %v98 = vld [vmem:[#allocation8] sm:$0xff]
    %v99 = vld [vmem:[#allocation3] sm:$0xff]
    %v100 = vpack.c.bf16 %v97, %v97
    %v105 = vunpack.c.l.b16 %v93
    %v106 = vunpack.c.l.b16 %v94
    %v107 = vunpack.c.l.b16 %v95
    %v108 = vunpack.c.l.b16 %v96
    %v109 = vpack.c.b16 %v106, %v105
    %v110 = vpack.c.b16 %v108, %v107
    %vm113 = vcmask 261120
    %v115 = vsel %vm113, %v100, 0
    %117 = vmatprep.subr.bf16.mxu0 0
    %118 = vmatpush1.bf16.msra.mxu0 0
    %119 = vmatprep.subr.bf16.mxu0 0
    %120 = vmatpush1.bf16.msra.mxu0 0
    %121 = vmatprep.subr.bf16.mxu0 0
    %122 = vmatpush1.bf16.msra.mxu0 0
    %123 = vmatprep.subr.bf16.mxu0 0
    %124 = vmatpush1.bf16.msra.mxu0 0
    %125 = vmatprep.subr.bf16.mxu0 0
    %126 = vmatpush1.bf16.msra.mxu0 0
    %127 = vmatprep.subr.bf16.mxu0 0
    %128 = vmatpush1.bf16.msra.mxu0 0
    %129 = vmatprep.subr.bf16.mxu0 0
    %130 = vmatpush1.bf16.msra.mxu0 %v110
    %131 = vmatprep.subr.bf16.mxu0 0
    %132 = vmatpush1.bf16.msra.mxu0 %v109
    %133 = vmatprep.subr.bf16.mxu0 0
    %134 = vmatpush2.bf16.msra.mxu0 0
    %135 = vmatprep.subr.bf16.mxu0 0
    %136 = vmatpush2.bf16.msra.mxu0 0
    %137 = vmatprep.subr.bf16.mxu0 0
    %138 = vmatpush2.bf16.msra.mxu0 0
    %139 = vmatprep.subr.bf16.mxu0 0
    %140 = vmatpush2.bf16.msra.mxu0 0
    %141 = vmatprep.subr.bf16.mxu0 0
    %142 = vmatpush2.bf16.msra.mxu0 0
    %143 = vmatprep.subr.bf16.mxu0 0
    %144 = vmatpush2.bf16.msra.mxu0 0
    %145 = vmatprep.subr.bf16.mxu0 0
    %146 = vmatpush2.bf16.msra.mxu0 0
    %147 = vmatprep.subr.bf16.mxu0 0
    %148 = vmatpush2.bf16.msra.mxu0 0
    %149 = vmatprep.mubr.bf16.mxu0 0
    %150 = vmatmul.mubr.bf16.gmra.mxu0 %v115
    %v151 = vpop.f32.mrf.mxu0
    %v152 = vadd.f32 0.0, %v151
    %v153 = vpop.f32.mrf.mxu0
    %v154 = vpop.f32.mrf.mxu0
    %v155 = vpop.f32.mrf.mxu0
    %156 = vdwg.mxu0
    %v157 = vadd.f32 %v99, %v152
    %v158 = vxor.u32 %v157, 2147483648
    %v159 = vmul.f32 %v158, 1.442695
    %v160 = vpow.pop %v159
    %v161 = vadd.f32 %v160, 1.0
    %v162 = vrcp.pop %v161
    %v163 = vmul.f32 1.0, %v162
    %v164 = vtanh.pop %v157
    %166 = vrot.lane.b32.xlu0 %v98, 32
    %v167 = vpop.permute.xlu0 %166
    %v169 = vmul.f32 %v163, %v167
    %171 = vrot.lane.b32.xlu0 %v164, 64
    %v172 = vpop.permute.xlu0 %171
    %v174 = vmul.f32 %v163, %v172
    %176 = vrot.lane.b32.xlu0 %v174, 32
    %v177 = vpop.permute.xlu0 %176
    %v179 = vadd.f32 %v169, %v177
    %v180 = vtanh.pop %v179
    %182 = vrot.lane.b32.xlu0 %v180, 64
    %v183 = vpop.permute.xlu0 %182
    %v185 = vmul.f32 %v163, %v183
    %187 = vrot.lane.b32.xlu0 %v185, 32
    %v188 = vpop.permute.xlu0 %187
    %190 = vst.msk [vmem:[#allocation2] sm:$0xff] %vm113, %v188
    %v191 = vld [vmem:[#allocation3 + $0x8] sm:$0xff]
    %v192 = vpack.c.bf16 %v185, %v185
    %194 = vrot.lane.b32.xlu0 %v192, 32
    %v195 = vpop.permute.xlu0 %194
    %v197 = vsel %vm113, %v195, 0
    %199 = vmatprep.subr.bf16.mxu0 0
    %200 = vmatpush1.bf16.msra.mxu0 0
    %201 = vmatprep.subr.bf16.mxu0 0
    %202 = vmatpush1.bf16.msra.mxu0 0
    %203 = vmatprep.subr.bf16.mxu0 0
    %204 = vmatpush1.bf16.msra.mxu0 0
    %205 = vmatprep.subr.bf16.mxu0 0
    %206 = vmatpush1.bf16.msra.mxu0 0
    %207 = vmatprep.subr.bf16.mxu0 0
    %208 = vmatpush1.bf16.msra.mxu0 0
    %209 = vmatprep.subr.bf16.mxu0 0
    %210 = vmatpush1.bf16.msra.mxu0 0
    %211 = vmatprep.subr.bf16.mxu0 0
    %212 = vmatpush1.bf16.msra.mxu0 %v110
    %213 = vmatprep.subr.bf16.mxu0 0
    %214 = vmatpush1.bf16.msra.mxu0 %v109
    %215 = vmatprep.subr.bf16.mxu0 0
    %216 = vmatpush2.bf16.msra.mxu0 0
    %217 = vmatprep.subr.bf16.mxu0 0
    %218 = vmatpush2.bf16.msra.mxu0 0
    %219 = vmatprep.subr.bf16.mxu0 0
    %220 = vmatpush2.bf16.msra.mxu0 0
    %221 = vmatprep.subr.bf16.mxu0 0
    %222 = vmatpush2.bf16.msra.mxu0 0
    %223 = vmatprep.subr.bf16.mxu0 0
    %224 = vmatpush2.bf16.msra.mxu0 0
    %225 = vmatprep.subr.bf16.mxu0 0
    %226 = vmatpush2.bf16.msra.mxu0 0
    %227 = vmatprep.subr.bf16.mxu0 0
    %228 = vmatpush2.bf16.msra.mxu0 0
    %229 = vmatprep.subr.bf16.mxu0 0
    %230 = vmatpush2.bf16.msra.mxu0 0
    %231 = vmatprep.mubr.bf16.mxu0 0
    %232 = vmatmul.mubr.bf16.gmra.mxu0 %v197
    %v233 = vpop.f32.mrf.mxu0
    %v234 = vadd.f32 0.0, %v233
    %v235 = vpop.f32.mrf.mxu0
    %v236 = vpop.f32.mrf.mxu0
    %v237 = vpop.f32.mrf.mxu0
    %238 = vdwg.mxu0
    %v239 = vadd.f32 %v191, %v234
    %v240 = vxor.u32 %v239, 2147483648
    %v241 = vmul.f32 %v240, 1.442695
    %v242 = vpow.pop %v241
    %v243 = vadd.f32 %v242, 1.0
    %v244 = vrcp.pop %v243
    %v245 = vmul.f32 1.0, %v244
    %v246 = vtanh.pop %v239
    %v247 = vmul.f32 %v245, %v179
    %249 = vrot.lane.b32.xlu0 %v246, 64
    %v250 = vpop.permute.xlu0 %249
    %v252 = vmul.f32 %v245, %v250
    %254 = vrot.lane.b32.xlu0 %v252, 32
    %v255 = vpop.permute.xlu0 %254
    %v257 = vadd.f32 %v247, %v255
    %v258 = vtanh.pop %v257
    %260 = vrot.lane.b32.xlu0 %v258, 64
    %v261 = vpop.permute.xlu0 %260
    %v263 = vmul.f32 %v245, %v261
    %265 = vrot.lane.b32.xlu0 %v263, 32
    %v266 = vpop.permute.xlu0 %265
    %268 = vst.msk [vmem:[#allocation2 + $0x8] sm:$0xff] %vm113, %v266
    %v269 = vld [vmem:[#allocation3 + $0x10] sm:$0xff]
    %v270 = vpack.c.bf16 %v263, %v263
    %272 = vrot.lane.b32.xlu0 %v270, 32
    %v273 = vpop.permute.xlu0 %272
    %v275 = vsel %vm113, %v273, 0
    %277 = vmatprep.subr.bf16.mxu0 0
    %278 = vmatpush1.bf16.msra.mxu0 0
    %279 = vmatprep.subr.bf16.mxu0 0
    %280 = vmatpush1.bf16.msra.mxu0 0
    %281 = vmatprep.subr.bf16.mxu0 0
    %282 = vmatpush1.bf16.msra.mxu0 0
    %283 = vmatprep.subr.bf16.mxu0 0
    %284 = vmatpush1.bf16.msra.mxu0 0
    %285 = vmatprep.subr.bf16.mxu0 0
    %286 = vmatpush1.bf16.msra.mxu0 0
    %287 = vmatprep.subr.bf16.mxu0 0
    %288 = vmatpush1.bf16.msra.mxu0 0
    %289 = vmatprep.subr.bf16.mxu0 0
    %290 = vmatpush1.bf16.msra.mxu0 %v110
    %291 = vmatprep.subr.bf16.mxu0 0
    %292 = vmatpush1.bf16.msra.mxu0 %v109
    %293 = vmatprep.subr.bf16.mxu0 0
    %294 = vmatpush2.bf16.msra.mxu0 0
    %295 = vmatprep.subr.bf16.mxu0 0
    %296 = vmatpush2.bf16.msra.mxu0 0
    %297 = vmatprep.subr.bf16.mxu0 0
    %298 = vmatpush2.bf16.msra.mxu0 0
    %299 = vmatprep.subr.bf16.mxu0 0
    %300 = vmatpush2.bf16.msra.mxu0 0
    %301 = vmatprep.subr.bf16.mxu0 0
    %302 = vmatpush2.bf16.msra.mxu0 0
    %303 = vmatprep.subr.bf16.mxu0 0
    %304 = vmatpush2.bf16.msra.mxu0 0
    %305 = vmatprep.subr.bf16.mxu0 0
    %306 = vmatpush2.bf16.msra.mxu0 0
    %307 = vmatprep.subr.bf16.mxu0 0
    %308 = vmatpush2.bf16.msra.mxu0 0
    %309 = vmatprep.mubr.bf16.mxu0 0
    %310 = vmatmul.mubr.bf16.gmra.mxu0 %v275
    %v311 = vpop.f32.mrf.mxu0
    %v312 = vadd.f32 0.0, %v311
    %v313 = vpop.f32.mrf.mxu0
    %v314 = vpop.f32.mrf.mxu0
    %v315 = vpop.f32.mrf.mxu0
    %316 = vdwg.mxu0
    %v317 = vadd.f32 %v269, %v312
    %v318 = vxor.u32 %v317, 2147483648
    %v319 = vmul.f32 %v318, 1.442695
    %v320 = vpow.pop %v319
    %v321 = vadd.f32 %v320, 1.0
    %v322 = vrcp.pop %v321
    %v323 = vmul.f32 1.0, %v322
    %v324 = vtanh.pop %v317
    %v325 = vmul.f32 %v323, %v257
    %327 = vrot.lane.b32.xlu0 %v324, 64
    %v328 = vpop.permute.xlu0 %327
    %v330 = vmul.f32 %v323, %v328
    %332 = vrot.lane.b32.xlu0 %v330, 32
    %v333 = vpop.permute.xlu0 %332
    %v335 = vadd.f32 %v325, %v333
    %v336 = vtanh.pop %v335
    %338 = vrot.lane.b32.xlu0 %v336, 64
    %v339 = vpop.permute.xlu0 %338
    %v341 = vmul.f32 %v323, %v339
    %343 = vrot.lane.b32.xlu0 %v341, 32
    %v344 = vpop.permute.xlu0 %343
    %346 = vst.msk [vmem:[#allocation2 + $0x10] sm:$0xff] %vm113, %v344
    %v347 = vld [vmem:[#allocation3 + $0x18] sm:$0xff]
    %v348 = vpack.c.bf16 %v341, %v341
    %350 = vrot.lane.b32.xlu0 %v348, 32
    %v351 = vpop.permute.xlu0 %350
    %v353 = vsel %vm113, %v351, 0
    %355 = vmatprep.subr.bf16.mxu0 0
    %356 = vmatpush1.bf16.msra.mxu0 0
    %357 = vmatprep.subr.bf16.mxu0 0
    %358 = vmatpush1.bf16.msra.mxu0 0
    %359 = vmatprep.subr.bf16.mxu0 0
    %360 = vmatpush1.bf16.msra.mxu0 0
    %361 = vmatprep.subr.bf16.mxu0 0
    %362 = vmatpush1.bf16.msra.mxu0 0
    %363 = vmatprep.subr.bf16.mxu0 0
    %364 = vmatpush1.bf16.msra.mxu0 0
    %365 = vmatprep.subr.bf16.mxu0 0
    %366 = vmatpush1.bf16.msra.mxu0 0
    %367 = vmatprep.subr.bf16.mxu0 0
    %368 = vmatpush1.bf16.msra.mxu0 %v110
    %369 = vmatprep.subr.bf16.mxu0 0
    %370 = vmatpush1.bf16.msra.mxu0 %v109
    %371 = vmatprep.subr.bf16.mxu0 0
    %372 = vmatpush2.bf16.msra.mxu0 0
    %373 = vmatprep.subr.bf16.mxu0 0
    %374 = vmatpush2.bf16.msra.mxu0 0
    %375 = vmatprep.subr.bf16.mxu0 0
    %376 = vmatpush2.bf16.msra.mxu0 0
    %377 = vmatprep.subr.bf16.mxu0 0
    %378 = vmatpush2.bf16.msra.mxu0 0
    %379 = vmatprep.subr.bf16.mxu0 0
    %380 = vmatpush2.bf16.msra.mxu0 0
    %381 = vmatprep.subr.bf16.mxu0 0
    %382 = vmatpush2.bf16.msra.mxu0 0
    %383 = vmatprep.subr.bf16.mxu0 0
    %384 = vmatpush2.bf16.msra.mxu0 0
    %385 = vmatprep.subr.bf16.mxu0 0
    %386 = vmatpush2.bf16.msra.mxu0 0
    %387 = vmatprep.mubr.bf16.mxu0 0
    %388 = vmatmul.mubr.bf16.gmra.mxu0 %v353
    %v389 = vpop.f32.mrf.mxu0
    %v390 = vadd.f32 0.0, %v389
    %v391 = vpop.f32.mrf.mxu0
    %v392 = vpop.f32.mrf.mxu0
    %v393 = vpop.f32.mrf.mxu0
    %394 = vdwg.mxu0
    %v395 = vadd.f32 %v347, %v390
    %v396 = vxor.u32 %v395, 2147483648
    %v397 = vmul.f32 %v396, 1.442695
    %v398 = vpow.pop %v397
    %v399 = vadd.f32 %v398, 1.0
    %v400 = vrcp.pop %v399
    %v401 = vmul.f32 1.0, %v400
    %v402 = vtanh.pop %v395
    %v403 = vmul.f32 %v401, %v335
    %405 = vrot.lane.b32.xlu0 %v402, 64
    %v406 = vpop.permute.xlu0 %405
    %v408 = vmul.f32 %v401, %v406
    %410 = vrot.lane.b32.xlu0 %v408, 32
    %v411 = vpop.permute.xlu0 %410
    %v413 = vadd.f32 %v403, %v411
    %v414 = vtanh.pop %v413
    %416 = vrot.lane.b32.xlu0 %v414, 64
    %v417 = vpop.permute.xlu0 %416
    %v419 = vmul.f32 %v401, %v417
    %421 = vrot.lane.b32.xlu0 %v419, 32
    %v422 = vpop.permute.xlu0 %421
    %424 = vst.msk [vmem:[#allocation2 + $0x18] sm:$0xff] %vm113, %v422
    %v425 = vld [vmem:[#allocation3 + $0x20] sm:$0xff]
    %v426 = vpack.c.bf16 %v419, %v419
    %428 = vrot.lane.b32.xlu0 %v426, 32
    %v429 = vpop.permute.xlu0 %428
    %v431 = vsel %vm113, %v429, 0
    %433 = vmatprep.subr.bf16.mxu0 0
    %434 = vmatpush1.bf16.msra.mxu0 0
    %435 = vmatprep.subr.bf16.mxu0 0
    %436 = vmatpush1.bf16.msra.mxu0 0
    %437 = vmatprep.subr.bf16.mxu0 0
    %438 = vmatpush1.bf16.msra.mxu0 0
    %439 = vmatprep.subr.bf16.mxu0 0
    %440 = vmatpush1.bf16.msra.mxu0 0
    %441 = vmatprep.subr.bf16.mxu0 0
    %442 = vmatpush1.bf16.msra.mxu0 0
    %443 = vmatprep.subr.bf16.mxu0 0
    %444 = vmatpush1.bf16.msra.mxu0 0
    %445 = vmatprep.subr.bf16.mxu0 0
    %446 = vmatpush1.bf16.msra.mxu0 %v110
    %447 = vmatprep.subr.bf16.mxu0 0
    %448 = vmatpush1.bf16.msra.mxu0 %v109
    %449 = vmatprep.subr.bf16.mxu0 0
    %450 = vmatpush2.bf16.msra.mxu0 0
    %451 = vmatprep.subr.bf16.mxu0 0
    %452 = vmatpush2.bf16.msra.mxu0 0
    %453 = vmatprep.subr.bf16.mxu0 0
    %454 = vmatpush2.bf16.msra.mxu0 0
    %455 = vmatprep.subr.bf16.mxu0 0
    %456 = vmatpush2.bf16.msra.mxu0 0
    %457 = vmatprep.subr.bf16.mxu0 0
    %458 = vmatpush2.bf16.msra.mxu0 0
    %459 = vmatprep.subr.bf16.mxu0 0
    %460 = vmatpush2.bf16.msra.mxu0 0
    %461 = vmatprep.subr.bf16.mxu0 0
    %462 = vmatpush2.bf16.msra.mxu0 0
    %463 = vmatprep.subr.bf16.mxu0 0
    %464 = vmatpush2.bf16.msra.mxu0 0
    %465 = vmatprep.mubr.bf16.mxu0 0
    %466 = vmatmul.mubr.bf16.gmra.mxu0 %v431
    %v467 = vpop.f32.mrf.mxu0
    %v468 = vadd.f32 0.0, %v467
    %v469 = vpop.f32.mrf.mxu0
    %v470 = vpop.f32.mrf.mxu0
    %v471 = vpop.f32.mrf.mxu0
    %472 = vdwg.mxu0
    %v473 = vadd.f32 %v425, %v468
    %v474 = vxor.u32 %v473, 2147483648
    %v475 = vmul.f32 %v474, 1.442695
    %v476 = vpow.pop %v475
    %v477 = vadd.f32 %v476, 1.0
    %v478 = vrcp.pop %v477
    %v479 = vmul.f32 1.0, %v478
    %v480 = vtanh.pop %v473
    %v481 = vmul.f32 %v479, %v413
    %483 = vrot.lane.b32.xlu0 %v480, 64
    %v484 = vpop.permute.xlu0 %483
    %v486 = vmul.f32 %v479, %v484
    %488 = vrot.lane.b32.xlu0 %v486, 32
    %v489 = vpop.permute.xlu0 %488
    %v491 = vadd.f32 %v481, %v489
    %v492 = vtanh.pop %v491
    %494 = vrot.lane.b32.xlu0 %v492, 64
    %v495 = vpop.permute.xlu0 %494
    %v497 = vmul.f32 %v479, %v495
    %499 = vrot.lane.b32.xlu0 %v497, 32
    %v500 = vpop.permute.xlu0 %499
    %502 = vst.msk [vmem:[#allocation2 + $0x20] sm:$0xff] %vm113, %v500
    %v503 = vld [vmem:[#allocation3 + $0x28] sm:$0xff]
    %v504 = vpack.c.bf16 %v497, %v497
    %506 = vrot.lane.b32.xlu0 %v504, 32
    %v507 = vpop.permute.xlu0 %506
    %v509 = vsel %vm113, %v507, 0
    %511 = vmatprep.subr.bf16.mxu0 0
    %512 = vmatpush1.bf16.msra.mxu0 0
    %513 = vmatprep.subr.bf16.mxu0 0
    %514 = vmatpush1.bf16.msra.mxu0 0
    %515 = vmatprep.subr.bf16.mxu0 0
    %516 = vmatpush1.bf16.msra.mxu0 0
    %517 = vmatprep.subr.bf16.mxu0 0
    %518 = vmatpush1.bf16.msra.mxu0 0
    %519 = vmatprep.subr.bf16.mxu0 0
    %520 = vmatpush1.bf16.msra.mxu0 0
    %521 = vmatprep.subr.bf16.mxu0 0
    %522 = vmatpush1.bf16.msra.mxu0 0
    %523 = vmatprep.subr.bf16.mxu0 0
    %524 = vmatpush1.bf16.msra.mxu0 %v110
    %525 = vmatprep.subr.bf16.mxu0 0
    %526 = vmatpush1.bf16.msra.mxu0 %v109
    %527 = vmatprep.subr.bf16.mxu0 0
    %528 = vmatpush2.bf16.msra.mxu0 0
    %529 = vmatprep.subr.bf16.mxu0 0
    %530 = vmatpush2.bf16.msra.mxu0 0
    %531 = vmatprep.subr.bf16.mxu0 0
    %532 = vmatpush2.bf16.msra.mxu0 0
    %533 = vmatprep.subr.bf16.mxu0 0
    %534 = vmatpush2.bf16.msra.mxu0 0
    %535 = vmatprep.subr.bf16.mxu0 0
    %536 = vmatpush2.bf16.msra.mxu0 0
    %537 = vmatprep.subr.bf16.mxu0 0
    %538 = vmatpush2.bf16.msra.mxu0 0
    %539 = vmatprep.subr.bf16.mxu0 0
    %540 = vmatpush2.bf16.msra.mxu0 0
    %541 = vmatprep.subr.bf16.mxu0 0
    %542 = vmatpush2.bf16.msra.mxu0 0
    %543 = vmatprep.mubr.bf16.mxu0 0
    %544 = vmatmul.mubr.bf16.gmra.mxu0 %v509
    %v545 = vpop.f32.mrf.mxu0
    %v546 = vadd.f32 0.0, %v545
    %v547 = vpop.f32.mrf.mxu0
    %v548 = vpop.f32.mrf.mxu0
    %v549 = vpop.f32.mrf.mxu0
    %550 = vdwg.mxu0
    %v551 = vadd.f32 %v503, %v546
    %v552 = vxor.u32 %v551, 2147483648
    %v553 = vmul.f32 %v552, 1.442695
    %v554 = vpow.pop %v553
    %v555 = vadd.f32 %v554, 1.0
    %v556 = vrcp.pop %v555
    %v557 = vmul.f32 1.0, %v556
    %v558 = vtanh.pop %v551
    %v559 = vmul.f32 %v557, %v491
    %561 = vrot.lane.b32.xlu0 %v558, 64
    %v562 = vpop.permute.xlu0 %561
    %v564 = vmul.f32 %v557, %v562
    %566 = vrot.lane.b32.xlu0 %v564, 32
    %v567 = vpop.permute.xlu0 %566
    %v569 = vadd.f32 %v559, %v567
    %v570 = vtanh.pop %v569
    %572 = vrot.lane.b32.xlu0 %v570, 64
    %v573 = vpop.permute.xlu0 %572
    %v575 = vmul.f32 %v557, %v573
    %577 = vrot.lane.b32.xlu0 %v575, 32
    %v578 = vpop.permute.xlu0 %577
    %580 = vst.msk [vmem:[#allocation2 + $0x28] sm:$0xff] %vm113, %v578
    %v581 = vld [vmem:[#allocation3 + $0x30] sm:$0xff]
    %v582 = vpack.c.bf16 %v575, %v575
    %584 = vrot.lane.b32.xlu0 %v582, 32
    %v585 = vpop.permute.xlu0 %584
    %v587 = vsel %vm113, %v585, 0
    %589 = vmatprep.subr.bf16.mxu0 0
    %590 = vmatpush1.bf16.msra.mxu0 0
    %591 = vmatprep.subr.bf16.mxu0 0
    %592 = vmatpush1.bf16.msra.mxu0 0
    %593 = vmatprep.subr.bf16.mxu0 0
    %594 = vmatpush1.bf16.msra.mxu0 0
    %595 = vmatprep.subr.bf16.mxu0 0
    %596 = vmatpush1.bf16.msra.mxu0 0
    %597 = vmatprep.subr.bf16.mxu0 0
    %598 = vmatpush1.bf16.msra.mxu0 0
    %599 = vmatprep.subr.bf16.mxu0 0
    %600 = vmatpush1.bf16.msra.mxu0 0
    %601 = vmatprep.subr.bf16.mxu0 0
    %602 = vmatpush1.bf16.msra.mxu0 %v110
    %603 = vmatprep.subr.bf16.mxu0 0
    %604 = vmatpush1.bf16.msra.mxu0 %v109
    %605 = vmatprep.subr.bf16.mxu0 0
    %606 = vmatpush2.bf16.msra.mxu0 0
    %607 = vmatprep.subr.bf16.mxu0 0
    %608 = vmatpush2.bf16.msra.mxu0 0
    %609 = vmatprep.subr.bf16.mxu0 0
    %610 = vmatpush2.bf16.msra.mxu0 0
    %611 = vmatprep.subr.bf16.mxu0 0
    %612 = vmatpush2.bf16.msra.mxu0 0
    %613 = vmatprep.subr.bf16.mxu0 0
    %614 = vmatpush2.bf16.msra.mxu0 0
    %615 = vmatprep.subr.bf16.mxu0 0
    %616 = vmatpush2.bf16.msra.mxu0 0
    %617 = vmatprep.subr.bf16.mxu0 0
    %618 = vmatpush2.bf16.msra.mxu0 0
    %619 = vmatprep.subr.bf16.mxu0 0
    %620 = vmatpush2.bf16.msra.mxu0 0
    %621 = vmatprep.mubr.bf16.mxu0 0
    %622 = vmatmul.mubr.bf16.gmra.mxu0 %v587
    %v623 = vpop.f32.mrf.mxu0
    %v624 = vadd.f32 0.0, %v623
    %v625 = vpop.f32.mrf.mxu0
    %v626 = vpop.f32.mrf.mxu0
    %v627 = vpop.f32.mrf.mxu0
    %628 = vdwg.mxu0
    %v629 = vadd.f32 %v581, %v624
    %v630 = vxor.u32 %v629, 2147483648
    %v631 = vmul.f32 %v630, 1.442695
    %v632 = vpow.pop %v631
    %v633 = vadd.f32 %v632, 1.0
    %v634 = vrcp.pop %v633
    %v635 = vmul.f32 1.0, %v634
    %v636 = vtanh.pop %v629
    %v637 = vmul.f32 %v635, %v569
    %639 = vrot.lane.b32.xlu0 %v636, 64
    %v640 = vpop.permute.xlu0 %639
    %v642 = vmul.f32 %v635, %v640
    %644 = vrot.lane.b32.xlu0 %v642, 32
    %v645 = vpop.permute.xlu0 %644
    %v647 = vadd.f32 %v637, %v645
    %v648 = vtanh.pop %v647
    %650 = vrot.lane.b32.xlu0 %v648, 64
    %v651 = vpop.permute.xlu0 %650
    %v653 = vmul.f32 %v635, %v651
    %655 = vrot.lane.b32.xlu0 %v653, 32
    %v656 = vpop.permute.xlu0 %655
    %658 = vst.msk [vmem:[#allocation2 + $0x30] sm:$0xff] %vm113, %v656
    %v659 = vld [vmem:[#allocation3 + $0x38] sm:$0xff]
    %v660 = vpack.c.bf16 %v653, %v653
    %662 = vrot.lane.b32.xlu0 %v660, 32
    %v663 = vpop.permute.xlu0 %662
    %v665 = vsel %vm113, %v663, 0
    %667 = vmatprep.subr.bf16.mxu0 0
    %668 = vmatpush1.bf16.msra.mxu0 0
    %669 = vmatprep.subr.bf16.mxu0 0
    %670 = vmatpush1.bf16.msra.mxu0 0
    %671 = vmatprep.subr.bf16.mxu0 0
    %672 = vmatpush1.bf16.msra.mxu0 0
    %673 = vmatprep.subr.bf16.mxu0 0
    %674 = vmatpush1.bf16.msra.mxu0 0
    %675 = vmatprep.subr.bf16.mxu0 0
    %676 = vmatpush1.bf16.msra.mxu0 0
    %677 = vmatprep.subr.bf16.mxu0 0
    %678 = vmatpush1.bf16.msra.mxu0 0
    %679 = vmatprep.subr.bf16.mxu0 0
    %680 = vmatpush1.bf16.msra.mxu0 %v110
    %681 = vmatprep.subr.bf16.mxu0 0
    %682 = vmatpush1.bf16.msra.mxu0 %v109
    %683 = vmatprep.subr.bf16.mxu0 0
    %684 = vmatpush2.bf16.msra.mxu0 0
    %685 = vmatprep.subr.bf16.mxu0 0
    %686 = vmatpush2.bf16.msra.mxu0 0
    %687 = vmatprep.subr.bf16.mxu0 0
    %688 = vmatpush2.bf16.msra.mxu0 0
    %689 = vmatprep.subr.bf16.mxu0 0
    %690 = vmatpush2.bf16.msra.mxu0 0
    %691 = vmatprep.subr.bf16.mxu0 0
    %692 = vmatpush2.bf16.msra.mxu0 0
    %693 = vmatprep.subr.bf16.mxu0 0
    %694 = vmatpush2.bf16.msra.mxu0 0
    %695 = vmatprep.subr.bf16.mxu0 0
    %696 = vmatpush2.bf16.msra.mxu0 0
    %697 = vmatprep.subr.bf16.mxu0 0
    %698 = vmatpush2.bf16.msra.mxu0 0
    %699 = vmatprep.mubr.bf16.mxu0 0
    %700 = vmatmul.mubr.bf16.gmra.mxu0 %v665
    %v701 = vpop.f32.mrf.mxu0
    %v702 = vadd.f32 0.0, %v701
    %v703 = vpop.f32.mrf.mxu0
    %v704 = vpop.f32.mrf.mxu0
    %v705 = vpop.f32.mrf.mxu0
    %706 = vdwg.mxu0
    %v707 = vadd.f32 %v659, %v702
    %v708 = vxor.u32 %v707, 2147483648
    %v709 = vmul.f32 %v708, 1.442695
    %v710 = vpow.pop %v709
    %v711 = vadd.f32 %v710, 1.0
    %v712 = vrcp.pop %v711
    %v713 = vmul.f32 1.0, %v712
    %v714 = vtanh.pop %v707
    %v715 = vmul.f32 %v713, %v647
    %717 = vrot.lane.b32.xlu0 %v714, 64
    %v718 = vpop.permute.xlu0 %717
    %v720 = vmul.f32 %v713, %v718
    %722 = vrot.lane.b32.xlu0 %v720, 32
    %v723 = vpop.permute.xlu0 %722
    %v725 = vadd.f32 %v715, %v723
    %v726 = vtanh.pop %v725
    %728 = vrot.lane.b32.xlu0 %v726, 64
    %v729 = vpop.permute.xlu0 %728
    %v731 = vmul.f32 %v713, %v729
    %733 = vrot.lane.b32.xlu0 %v731, 32
    %v734 = vpop.permute.xlu0 %733
    %736 = vst.msk [vmem:[#allocation2 + $0x38] sm:$0xff] %vm113, %v734
    %737 = vst.msk [vmem:[#allocation13] sm:$0xff] %vm113, %v734
    %739 = vrot.lane.b32.xlu0 %v725, 96
    %v740 = vpop.permute.xlu0 %739
    %742 = vst.msk [vmem:[#allocation15] sm:$0xff] %vm113, %v740
    %v743 = vld [vmem:[#allocation2] sm:$0xff]
    %v744 = vld [vmem:[#allocation2 + $0x8] sm:$0xff]
    %v745 = vld [vmem:[#allocation2 + $0x10] sm:$0xff]
    %v746 = vld [vmem:[#allocation2 + $0x18] sm:$0xff]
    %v747 = vld [vmem:[#allocation2 + $0x20] sm:$0xff]
    %v748 = vld [vmem:[#allocation2 + $0x28] sm:$0xff]
    %v749 = vld [vmem:[#allocation2 + $0x30] sm:$0xff]
    %v750 = vld [vmem:[#allocation2 + $0x38] sm:$0xff]
    %v751 = vpack.c.bf16 %v744, %v743
    %v752 = vpack.c.bf16 %v746, %v745
    %v753 = vpack.c.bf16 %v748, %v747
    %v754 = vpack.c.bf16 %v750, %v749
    %v755 = vld [vmem:[#allocation11] sm:$0xf]
    %v756 = vld [vmem:[#allocation11 + $0x4] sm:$0xf]
    %v757 = vld [vmem:[#allocation11 + $0x8] sm:$0xf]
    %v758 = vld [vmem:[#allocation11 + $0xc] sm:$0xf]
    %v759 = vld [vmem:[%s5] sm:$0x1]
    %v761 = vlaneseq
    %v762 = vshrl.u32 %v761, 7
    %v763 = vsub.s32 0, %v762
    %v764 = vrot.slane %v759, %v763
    %v770 = vunpack.c.l.b16 %v755
    %v771 = vunpack.c.l.b16 %v756
    %v772 = vunpack.c.l.b16 %v757
    %v773 = vunpack.c.l.b16 %v758
    %v774 = vpack.c.b16 %v771, %v770
    %v775 = vpack.c.b16 %v773, %v772
    %v779 = vsel %vm113, %v751, 0
    %v782 = vsel %vm113, %v752, 0
    %v785 = vsel %vm113, %v753, 0
    %v788 = vsel %vm113, %v754, 0
    %790 = vmatprep.subr.bf16.mxu0 0
    %791 = vmatpush1.bf16.msra.mxu0 0
    %792 = vmatprep.subr.bf16.mxu0 0
    %793 = vmatpush1.bf16.msra.mxu0 0
    %794 = vmatprep.subr.bf16.mxu0 0
    %795 = vmatpush1.bf16.msra.mxu0 0
    %796 = vmatprep.subr.bf16.mxu0 0
    %797 = vmatpush1.bf16.msra.mxu0 0
    %798 = vmatprep.subr.bf16.mxu0 0
    %799 = vmatpush1.bf16.msra.mxu0 0
    %800 = vmatprep.subr.bf16.mxu0 0
    %801 = vmatpush1.bf16.msra.mxu0 0
    %802 = vmatprep.subr.bf16.mxu0 0
    %803 = vmatpush1.bf16.msra.mxu0 %v775
    %804 = vmatprep.subr.bf16.mxu0 0
    %805 = vmatpush1.bf16.msra.mxu0 %v774
    %806 = vmatprep.subr.bf16.mxu0 0
    %807 = vmatpush2.bf16.msra.mxu0 0
    %808 = vmatprep.subr.bf16.mxu0 0
    %809 = vmatpush2.bf16.msra.mxu0 0
    %810 = vmatprep.subr.bf16.mxu0 0
    %811 = vmatpush2.bf16.msra.mxu0 0
    %812 = vmatprep.subr.bf16.mxu0 0
    %813 = vmatpush2.bf16.msra.mxu0 0
    %814 = vmatprep.subr.bf16.mxu0 0
    %815 = vmatpush2.bf16.msra.mxu0 0
    %816 = vmatprep.subr.bf16.mxu0 0
    %817 = vmatpush2.bf16.msra.mxu0 0
    %818 = vmatprep.subr.bf16.mxu0 0
    %819 = vmatpush2.bf16.msra.mxu0 0
    %820 = vmatprep.subr.bf16.mxu0 0
    %821 = vmatpush2.bf16.msra.mxu0 0
    %822 = vmatprep.mubr.bf16.mxu0 0
    %823 = vmatmul.mubr.bf16.gmra.mxu0 %v779
    %v824 = vpop.f32.mrf.mxu0
    %v825 = vadd.f32 %v764, %v824
    %v826 = vpop.f32.mrf.mxu0
    %v827 = vpop.f32.mrf.mxu0
    %v828 = vadd.f32 %v764, %v827
    %v829 = vpop.f32.mrf.mxu0
    %830 = vmatprep.mubr.bf16.mxu0 0
    %831 = vmatmul.mubr.bf16.gmra.mxu0 %v782
    %v832 = vpop.f32.mrf.mxu0
    %v833 = vadd.f32 %v764, %v832
    %v834 = vpop.f32.mrf.mxu0
    %v835 = vpop.f32.mrf.mxu0
    %v836 = vadd.f32 %v764, %v835
    %v837 = vpop.f32.mrf.mxu0
    %838 = vmatprep.mubr.bf16.mxu0 0
    %839 = vmatmul.mubr.bf16.gmra.mxu0 %v785
    %v840 = vpop.f32.mrf.mxu0
    %v841 = vadd.f32 %v764, %v840
    %v842 = vpop.f32.mrf.mxu0
    %v843 = vpop.f32.mrf.mxu0
    %v844 = vadd.f32 %v764, %v843
    %v845 = vpop.f32.mrf.mxu0
    %846 = vmatprep.mubr.bf16.mxu0 0
    %847 = vmatmul.mubr.bf16.gmra.mxu0 %v788
    %v848 = vpop.f32.mrf.mxu0
    %v849 = vadd.f32 %v764, %v848
    %v850 = vpop.f32.mrf.mxu0
    %v851 = vpop.f32.mrf.mxu0
    %v852 = vadd.f32 %v764, %v851
    %v853 = vpop.f32.mrf.mxu0
    %854 = vdwg.mxu0
    %855 = vst [vmem:[#allocation12] sm:$0xff] %v825
    %856 = vst [vmem:[#allocation12 + $0x8] sm:$0xff] %v828
    %857 = vst [vmem:[#allocation12 + $0x10] sm:$0xff] %v833
    %858 = vst [vmem:[#allocation12 + $0x18] sm:$0xff] %v836
    %859 = vst [vmem:[#allocation12 + $0x20] sm:$0xff] %v841
    %860 = vst [vmem:[#allocation12 + $0x28] sm:$0xff] %v844
    %861 = vst [vmem:[#allocation12 + $0x30] sm:$0xff] %v849
    %862 = vst [vmem:[#allocation12 + $0x38] sm:$0xff] %v852
    // Predicated region
    $region46: #{tpu_custom_call.1} parent=1 // pred_check
      _
    $region47: #{tpu_custom_call.1} parent=1 // pred_check_branch
      %864 = sbr.rel (0) target = $region49
    $region48: #{tpu_custom_call.1} parent=1 // pred_region
      %s866 = ssub.s32 1024, 1024
      %867 = vsyncadd [#allocation5], %s866
      %s868 = sshll.u32 [#allocation12], 4
      %s869 = int_to_ptr.vmem [resolvable:$true] %s868
      %874 = dma.vmem_to_hbm [thread:$0]  %s869, 1024, %s6, [#allocation5], 128, 128, 8
    $region49: #{tpu_custom_call.1} parent=1 // pred_fallthru
      _
    // Predicated region
    $region50: #{tpu_custom_call.1} parent=1 // pred_check
      _
    $region51: #{tpu_custom_call.1} parent=1 // pred_check_branch
      %876 = sbr.rel (0) target = $region53
    $region52: #{tpu_custom_call.1} parent=1 // pred_region
      %s878 = ssub.s32 128, 128
      %879 = vsyncadd [#allocation14], %s878
      %s881 = sshll.u32 [#allocation13], 4
      %s882 = int_to_ptr.vmem [resolvable:$true] %s881
      %884 = dma.vmem_to_hbm [thread:$0]  %s882, 128, %s7, [#allocation14]
    $region53: #{tpu_custom_call.1} parent=1 // pred_fallthru
      _
    // Predicated region
    $region54: #{tpu_custom_call.1} parent=1 // pred_check
      _
    $region55: #{tpu_custom_call.1} parent=1 // pred_check_branch
      %886 = sbr.rel (0) target = $region57
    $region56: #{tpu_custom_call.1} parent=1 // pred_region
      %s888 = ssub.s32 128, 128
      %889 = vsyncadd [#allocation14], %s888
      %s891 = sshll.u32 [#allocation15], 4
      %s892 = int_to_ptr.vmem [resolvable:$true] %s891
      %894 = dma.vmem_to_hbm [thread:$0]  %s892, 128, %s8, [#allocation14]
    $region57: #{tpu_custom_call.1} parent=1 // pred_fallthru
      _
    // Predicated region
    $region58: #{tpu_custom_call.1} parent=1 // pred_check
      _
    $region59: #{tpu_custom_call.1} parent=1 // pred_check_branch
      %896 = sbr.rel (0) target = $region61
    $region60: #{tpu_custom_call.1} parent=1 // pred_region
      %897 = dma.done [#allocation5], 1024
    $region61: #{tpu_custom_call.1} parent=1 // pred_fallthru
      _
    // Predicated region
    $region62: #{tpu_custom_call.1} parent=1 // pred_check
      _
    $region63: #{tpu_custom_call.1} parent=1 // pred_check_branch
      %899 = sbr.rel (0) target = $region65
    $region64: #{tpu_custom_call.1} parent=1 // pred_region
      %900 = dma.done [#allocation14], 128
    $region65: #{tpu_custom_call.1} parent=1 // pred_fallthru
      _
    // Predicated region
    $region66: #{tpu_custom_call.1} parent=1 // pred_check
      _
    $region67: #{tpu_custom_call.1} parent=1 // pred_check_branch
      %902 = sbr.rel (0) target = $region69
    $region68: #{tpu_custom_call.1} parent=1 // pred_region
      %903 = dma.done [#allocation14], 128
    $region69: #{tpu_custom_call.1} parent=1 // pred_fallthru
      _
    %904 = vsyncpa [#allocation4], 1
    %905 = vsyncpa [#allocation7], 1
    %906 = vsyncpa [#allocation10], 1
    %907 = vsyncpa [#allocation5], 1
    %908 = vsyncpa [#allocation14], 1

</llo_original>
